<compile_context>
chip_gen: v7x
topology: tpu7x:2x2x1
jax: 0.10.0
libtpu: 0.0.40
codegen_flags: <defaults>
</compile_context>

<pallas_src>
import jax
import jax.numpy as jnp
from jax.experimental import pallas as pl
from jax.experimental.pallas import tpu as pltpu

TEMPERATURE = 1.0   # CFG.temperature
LN_EPS = 1e-5       # nn.LayerNorm default eps
_SQRT_HALF = 0.7071067811865476


# ----------------------------- in-kernel helpers -----------------------------

def _gelu_exact(x):
    # nn.GELU() default = exact (erf-based) GELU.
    return 0.5 * x * (1.0 + jax.lax.erf(x * _SQRT_HALF))


def _projection_head(x, w1, b1, w2, b2, gamma, beta):
    # projected = Linear(embedding_dim, projection_dim)(x)
    projected = jnp.dot(x, w1, preferred_element_type=jnp.float32) + b1
    h = _gelu_exact(projected)
    h = jnp.dot(h, w2, preferred_element_type=jnp.float32) + b2
    # Dropout is identity in eval mode.
    # TODO(synk): training-mode dropout (random masking) not implemented.
    h = h + projected
    mu = jnp.mean(h, axis=-1, keepdims=True)
    var = jnp.mean((h - mu) * (h - mu), axis=-1, keepdims=True)
    xhat = (h - mu) * jax.lax.rsqrt(var + LN_EPS)
    return xhat * gamma + beta


# --------------------------------- kernel ------------------------------------

def clip_loss_kernel(img_ref, txt_ref, iw1_ref, iw2_ref, tw1_ref, tw2_ref,
                     vec_ref, loss_ref):
    B = img_ref.shape[0]

    # Packed (8, PROJ) vector bank: ib1, ib2, ig, ibt, tb1, tb2, tg, tbt.
    vecs = vec_ref[...]
    ib1, ib2, ig, ibt = vecs[0:1], vecs[1:2], vecs[2:3], vecs[3:4]
    tb1, tb2, tg, tbt = vecs[4:5], vecs[5:6], vecs[6:7], vecs[7:8]

    image_emb = _projection_head(img_ref[...].astype(jnp.float32),
                                 iw1_ref[...], ib1, iw2_ref[...], ib2, ig, ibt)
    text_emb = _projection_head(txt_ref[...].astype(jnp.float32),
                                tw1_ref[...], tb1, tw2_ref[...], tb2, tg, tbt)

    # One fused [2B, PROJ] x [2B, PROJ]^T similarity matmul, contraction on the
    # last dims of both operands (feeds the MXU directly, no transposes).
    emb = jnp.concatenate([image_emb, text_emb], axis=0)            # [2B, PROJ]
    sim = jax.lax.dot_general(emb, emb, (((1,), (1,)), ((), ())),
                              preferred_element_type=jnp.float32)   # [2B, 2B]

    images_similarity = sim[:B, :B]   # image_emb @ image_emb.T
    texts_similarity = sim[B:, B:]    # text_emb  @ text_emb.T
    logits = sim[B:, :B]              # text_emb  @ image_emb.T
    if TEMPERATURE != 1.0:            # fold /temperature into a constant mul
        logits = logits * (1.0 / TEMPERATURE)

    # targets = softmax((img_sim + txt_sim)/2 * temperature, dim=-1)
    t_in = (images_similarity + texts_similarity) * (0.5 * TEMPERATURE)
    t_max = jnp.max(t_in, axis=-1, keepdims=True)
    t_exp = jnp.exp(t_in - t_max)
    targets = t_exp * pl.reciprocal(jnp.sum(t_exp, axis=-1, keepdims=True))

    # loss = mean((CE(logits, targets) + CE(logits.T, targets.T)) / 2)
    #      = sum_ij[ -targets_ij * (row_lsm_ij + col_lsm_ij) ] / (2B)
    # The transposed CE is evaluated via a column (axis=0) log-softmax, so no
    # [B, B] transpose or extra materialization is needed.
    row_m = jnp.max(logits, axis=-1, keepdims=True)
    row_s = logits - row_m
    row_lsm = row_s - jnp.log(jnp.sum(jnp.exp(row_s), axis=-1, keepdims=True))

    col_m = jnp.max(logits, axis=0, keepdims=True)
    col_s = logits - col_m
    col_lsm = col_s - jnp.log(jnp.sum(jnp.exp(col_s), axis=0, keepdims=True))

    loss = jnp.sum(-targets * (row_lsm + col_lsm)) * (1.0 / (2.0 * B))
    loss_ref[0, 0] = loss


# -------------------------------- wrapper ------------------------------------

@jax.jit
def clip_loss(image_features, text_features, params):
    """params: tuple of 12 arrays (image head: w1,b1,w2,b2,gamma,beta;
    text head: w1,b1,w2,b2,gamma,beta)."""
    (iw1, ib1, iw2, ib2, ig, ibt, tw1, tb1, tw2, tb2, tg, tbt) = params
    # Pack the eight (1, PROJ) vectors into one [8, PROJ] input: one DMA and
    # one (8,128) VMEM tile instead of eight separately padded tiles.
    vecs = jnp.concatenate([ib1, ib2, ig, ibt, tb1, tb2, tg, tbt], axis=0)

    args = (image_features, text_features, iw1, iw2, tw1, tw2, vecs)
    vmem = pl.BlockSpec(memory_space=pltpu.MemorySpace.VMEM)
    # TODO(synk): at real CLIP batch sizes (B in the thousands) the grid-less
    # design must become a row-tiled grid with online (flash-style) row/column
    # log-softmax; B^2 f32 buffers would exceed VMEM (esp. v7x's 64 MiB).
    out = pl.pallas_call(
        clip_loss_kernel,
        out_shape=jax.ShapeDtypeStruct((1, 1), jnp.float32),
        in_specs=[vmem] * len(args),
        out_specs=pl.BlockSpec(memory_space=pltpu.MemorySpace.SMEM),
    )(*args)
    return out[0, 0]


# --------------------------- pure-JAX reference -------------------------------

def clip_loss_ref(image_features, text_features, params):
    (iw1, ib1, iw2, ib2, ig, ibt, tw1, tb1, tw2, tb2, tg, tbt) = params

    def head(x, w1, b1, w2, b2, g, bt):
        p = x @ w1 + b1
        h = 0.5 * p * (1.0 + jax.lax.erf(p / jnp.sqrt(2.0)))
        h = h @ w2 + b2
        h = h + p
        mu = jnp.mean(h, axis=-1, keepdims=True)
        var = jnp.mean((h - mu) ** 2, axis=-1, keepdims=True)
        return (h - mu) / jnp.sqrt(var + LN_EPS) * g + bt

    ie = head(image_features.astype(jnp.float32), iw1, ib1, iw2, ib2, ig, ibt)
    te = head(text_features.astype(jnp.float32), tw1, tb1, tw2, tb2, tg, tbt)
    logits = te @ ie.T / TEMPERATURE
    targets = jax.nn.softmax((ie @ ie.T + te @ te.T) / 2.0 * TEMPERATURE, axis=-1)
    tl = jnp.sum(-targets * jax.nn.log_softmax(logits, axis=-1), axis=1)
    il = jnp.sum(-targets.T * jax.nn.log_softmax(logits.T, axis=-1), axis=1)
    return jnp.mean((il + tl) / 2.0)


# ---------------------------------- main --------------------------------------

def make_params(key, d_in, proj_dim):
    k1, k2, k3, k4 = jax.random.split(key, 4)
    w1 = jax.random.normal(k1, (d_in, proj_dim), jnp.float32) * (1.0 / jnp.sqrt(d_in))
    b1 = jax.random.normal(k2, (1, proj_dim), jnp.float32) * 0.01
    w2 = jax.random.normal(k3, (proj_dim, proj_dim), jnp.float32) * (1.0 / jnp.sqrt(proj_dim))
    b2 = jax.random.normal(k4, (1, proj_dim), jnp.float32) * 0.01
    gamma = jnp.ones((1, proj_dim), jnp.float32)
    beta = jnp.zeros((1, proj_dim), jnp.float32)
    return (w1, b1, w2, b2, gamma, beta)


if __name__ == "__main__":
    # Small shapes: batch=8, image_embedding=256, text_embedding=128, projection_dim=128.
    B, D_IMG, D_TXT, PROJ = 8, 256, 128, 128

    key = jax.random.PRNGKey(0)
    k_img, k_txt, k_ip, k_tp = jax.random.split(key, 4)

    # Encoder outputs (backbones are external pretrained models; their outputs
    # are the kernel's inputs).
    image_features = jax.random.normal(k_img, (B, D_IMG), jnp.float32)
    text_features = jax.random.normal(k_txt, (B, D_TXT), jnp.float32)

    img_head = make_params(k_ip, D_IMG, PROJ)
    txt_head = make_params(k_tp, D_TXT, PROJ)
    params = img_head + txt_head

    loss = clip_loss(image_features, text_features, params)
    loss = jax.block_until_ready(loss)

    ref = clip_loss_ref(image_features, text_features, params)
    assert jnp.isfinite(loss), "non-finite loss"
    assert jnp.allclose(loss, ref, rtol=1e-4, atol=1e-5), (loss, ref)

    print("KERNEL_OK")
</pallas_src>

<mosaic_0001>
module attributes {stable_mosaic.version = 11 : i64} {
  func.func @clip_loss_kernel(%arg0: memref<8x256xf32, #tpu.memory_space<vmem>>, %arg1: memref<8x128xf32, #tpu.memory_space<vmem>>, %arg2: memref<256x128xf32, #tpu.memory_space<vmem>>, %arg3: memref<128x128xf32, #tpu.memory_space<vmem>>, %arg4: memref<128x128xf32, #tpu.memory_space<vmem>>, %arg5: memref<128x128xf32, #tpu.memory_space<vmem>>, %arg6: memref<8x128xf32, #tpu.memory_space<vmem>>, %arg7: memref<1x1xf32, #tpu.memory_space<smem>>) attributes {dimension_semantics = [], scalar_prefetch = 0 : i64, scratch_operands = 0 : i64, tpu.core_type = #tpu.core_type<tc>} {
    %c0 = arith.constant 0 : index
    %c0_0 = arith.constant 0 : index
    %0 = vector.load %arg6[%c0, %c0_0] : memref<8x128xf32, #tpu.memory_space<vmem>>, vector<8x128xf32>
    %1 = vector.extract_strided_slice %0 {offsets = [0, 0], sizes = [1, 128], strides = [1, 1]} : vector<8x128xf32> to vector<1x128xf32>
    %2 = vector.extract_strided_slice %0 {offsets = [1, 0], sizes = [1, 128], strides = [1, 1]} : vector<8x128xf32> to vector<1x128xf32>
    %3 = vector.extract_strided_slice %0 {offsets = [2, 0], sizes = [1, 128], strides = [1, 1]} : vector<8x128xf32> to vector<1x128xf32>
    %4 = vector.extract_strided_slice %0 {offsets = [3, 0], sizes = [1, 128], strides = [1, 1]} : vector<8x128xf32> to vector<1x128xf32>
    %5 = vector.extract_strided_slice %0 {offsets = [4, 0], sizes = [1, 128], strides = [1, 1]} : vector<8x128xf32> to vector<1x128xf32>
    %6 = vector.extract_strided_slice %0 {offsets = [5, 0], sizes = [1, 128], strides = [1, 1]} : vector<8x128xf32> to vector<1x128xf32>
    %7 = vector.extract_strided_slice %0 {offsets = [6, 0], sizes = [1, 128], strides = [1, 1]} : vector<8x128xf32> to vector<1x128xf32>
    %8 = vector.extract_strided_slice %0 {offsets = [7, 0], sizes = [1, 128], strides = [1, 1]} : vector<8x128xf32> to vector<1x128xf32>
    %c0_1 = arith.constant 0 : index
    %c0_2 = arith.constant 0 : index
    %9 = vector.load %arg0[%c0_1, %c0_2] : memref<8x256xf32, #tpu.memory_space<vmem>>, vector<8x256xf32>
    %c0_3 = arith.constant 0 : index
    %c0_4 = arith.constant 0 : index
    %10 = vector.load %arg2[%c0_3, %c0_4] : memref<256x128xf32, #tpu.memory_space<vmem>>, vector<256x128xf32>
    %c0_5 = arith.constant 0 : index
    %c0_6 = arith.constant 0 : index
    %11 = vector.load %arg3[%c0_5, %c0_6] : memref<128x128xf32, #tpu.memory_space<vmem>>, vector<128x128xf32>
    %cst = arith.constant dense<0.000000e+00> : vector<8x128xf32>
    %12 = tpu.matmul %9, %10, %cst {dimension_numbers = #tpu.dot_dimension_numbers<[1], [0], [0], [1], [0, 0, 1, 1], [], []>} : vector<8x256xf32>, vector<256x128xf32>, vector<8x128xf32> -> vector<8x128xf32>
    %13 = vector.broadcast %1 : vector<1x128xf32> to vector<8x128xf32>
    %14 = arith.addf %12, %13 : vector<8x128xf32>
    %cst_7 = arith.constant 5.000000e-01 : f32
    %15 = vector.broadcast %cst_7 : f32 to vector<8x128xf32>
    %16 = arith.mulf %15, %14 : vector<8x128xf32>
    %cst_8 = arith.constant 0.707106769 : f32
    %17 = vector.broadcast %cst_8 : f32 to vector<8x128xf32>
    %18 = arith.mulf %14, %17 : vector<8x128xf32>
    %19 = math.erf %18 : vector<8x128xf32>
    %cst_9 = arith.constant 1.000000e+00 : f32
    %20 = vector.broadcast %cst_9 : f32 to vector<8x128xf32>
    %21 = arith.addf %20, %19 : vector<8x128xf32>
    %22 = arith.mulf %16, %21 : vector<8x128xf32>
    %cst_10 = arith.constant dense<0.000000e+00> : vector<8x128xf32>
    %23 = tpu.matmul %22, %11, %cst_10 {dimension_numbers = #tpu.dot_dimension_numbers<[1], [0], [0], [1], [0, 0, 1, 1], [], []>} : vector<8x128xf32>, vector<128x128xf32>, vector<8x128xf32> -> vector<8x128xf32>
    %24 = vector.broadcast %2 : vector<1x128xf32> to vector<8x128xf32>
    %25 = arith.addf %23, %24 : vector<8x128xf32>
    %26 = arith.addf %25, %14 : vector<8x128xf32>
    %cst_11 = arith.constant dense<0.000000e+00> : vector<8xf32>
    %27 = vector.multi_reduction <add>, %26, %cst_11 [1] : vector<8x128xf32> to vector<8xf32>
    %28 = vector.shape_cast %27 : vector<8xf32> to vector<8x1xf32>
    %cst_12 = arith.constant 1.280000e+02 : f32
    %29 = vector.broadcast %cst_12 : f32 to vector<8x1xf32>
    %30 = arith.divf %28, %29 : vector<8x1xf32>
    %31 = vector.broadcast %30 : vector<8x1xf32> to vector<8x128xf32>
    %32 = arith.subf %26, %31 : vector<8x128xf32>
    %33 = vector.broadcast %30 : vector<8x1xf32> to vector<8x128xf32>
    %34 = arith.subf %26, %33 : vector<8x128xf32>
    %35 = arith.mulf %32, %34 : vector<8x128xf32>
    %cst_13 = arith.constant dense<0.000000e+00> : vector<8xf32>
    %36 = vector.multi_reduction <add>, %35, %cst_13 [1] : vector<8x128xf32> to vector<8xf32>
    %37 = vector.shape_cast %36 : vector<8xf32> to vector<8x1xf32>
    %cst_14 = arith.constant 1.280000e+02 : f32
    %38 = vector.broadcast %cst_14 : f32 to vector<8x1xf32>
    %39 = arith.divf %37, %38 : vector<8x1xf32>
    %40 = vector.broadcast %30 : vector<8x1xf32> to vector<8x128xf32>
    %41 = arith.subf %26, %40 : vector<8x128xf32>
    %cst_15 = arith.constant 9.99999974E-6 : f32
    %42 = vector.broadcast %cst_15 : f32 to vector<8x1xf32>
    %43 = arith.addf %39, %42 : vector<8x1xf32>
    %44 = math.rsqrt %43 : vector<8x1xf32>
    %45 = vector.broadcast %44 : vector<8x1xf32> to vector<8x128xf32>
    %46 = arith.mulf %41, %45 : vector<8x128xf32>
    %47 = vector.broadcast %3 : vector<1x128xf32> to vector<8x128xf32>
    %48 = arith.mulf %46, %47 : vector<8x128xf32>
    %49 = vector.broadcast %4 : vector<1x128xf32> to vector<8x128xf32>
    %50 = arith.addf %48, %49 : vector<8x128xf32>
    %c0_16 = arith.constant 0 : index
    %c0_17 = arith.constant 0 : index
    %51 = vector.load %arg1[%c0_16, %c0_17] : memref<8x128xf32, #tpu.memory_space<vmem>>, vector<8x128xf32>
    %c0_18 = arith.constant 0 : index
    %c0_19 = arith.constant 0 : index
    %52 = vector.load %arg4[%c0_18, %c0_19] : memref<128x128xf32, #tpu.memory_space<vmem>>, vector<128x128xf32>
    %c0_20 = arith.constant 0 : index
    %c0_21 = arith.constant 0 : index
    %53 = vector.load %arg5[%c0_20, %c0_21] : memref<128x128xf32, #tpu.memory_space<vmem>>, vector<128x128xf32>
    %cst_22 = arith.constant dense<0.000000e+00> : vector<8x128xf32>
    %54 = tpu.matmul %51, %52, %cst_22 {dimension_numbers = #tpu.dot_dimension_numbers<[1], [0], [0], [1], [0, 0, 1, 1], [], []>} : vector<8x128xf32>, vector<128x128xf32>, vector<8x128xf32> -> vector<8x128xf32>
    %55 = vector.broadcast %5 : vector<1x128xf32> to vector<8x128xf32>
    %56 = arith.addf %54, %55 : vector<8x128xf32>
    %cst_23 = arith.constant 5.000000e-01 : f32
    %57 = vector.broadcast %cst_23 : f32 to vector<8x128xf32>
    %58 = arith.mulf %57, %56 : vector<8x128xf32>
    %cst_24 = arith.constant 0.707106769 : f32
    %59 = vector.broadcast %cst_24 : f32 to vector<8x128xf32>
    %60 = arith.mulf %56, %59 : vector<8x128xf32>
    %61 = math.erf %60 : vector<8x128xf32>
    %cst_25 = arith.constant 1.000000e+00 : f32
    %62 = vector.broadcast %cst_25 : f32 to vector<8x128xf32>
    %63 = arith.addf %62, %61 : vector<8x128xf32>
    %64 = arith.mulf %58, %63 : vector<8x128xf32>
    %cst_26 = arith.constant dense<0.000000e+00> : vector<8x128xf32>
    %65 = tpu.matmul %64, %53, %cst_26 {dimension_numbers = #tpu.dot_dimension_numbers<[1], [0], [0], [1], [0, 0, 1, 1], [], []>} : vector<8x128xf32>, vector<128x128xf32>, vector<8x128xf32> -> vector<8x128xf32>
    %66 = vector.broadcast %6 : vector<1x128xf32> to vector<8x128xf32>
    %67 = arith.addf %65, %66 : vector<8x128xf32>
    %68 = arith.addf %67, %56 : vector<8x128xf32>
    %cst_27 = arith.constant dense<0.000000e+00> : vector<8xf32>
    %69 = vector.multi_reduction <add>, %68, %cst_27 [1] : vector<8x128xf32> to vector<8xf32>
    %70 = vector.shape_cast %69 : vector<8xf32> to vector<8x1xf32>
    %cst_28 = arith.constant 1.280000e+02 : f32
    %71 = vector.broadcast %cst_28 : f32 to vector<8x1xf32>
    %72 = arith.divf %70, %71 : vector<8x1xf32>
    %73 = vector.broadcast %72 : vector<8x1xf32> to vector<8x128xf32>
    %74 = arith.subf %68, %73 : vector<8x128xf32>
    %75 = vector.broadcast %72 : vector<8x1xf32> to vector<8x128xf32>
    %76 = arith.subf %68, %75 : vector<8x128xf32>
    %77 = arith.mulf %74, %76 : vector<8x128xf32>
    %cst_29 = arith.constant dense<0.000000e+00> : vector<8xf32>
    %78 = vector.multi_reduction <add>, %77, %cst_29 [1] : vector<8x128xf32> to vector<8xf32>
    %79 = vector.shape_cast %78 : vector<8xf32> to vector<8x1xf32>
    %cst_30 = arith.constant 1.280000e+02 : f32
    %80 = vector.broadcast %cst_30 : f32 to vector<8x1xf32>
    %81 = arith.divf %79, %80 : vector<8x1xf32>
    %82 = vector.broadcast %72 : vector<8x1xf32> to vector<8x128xf32>
    %83 = arith.subf %68, %82 : vector<8x128xf32>
    %cst_31 = arith.constant 9.99999974E-6 : f32
    %84 = vector.broadcast %cst_31 : f32 to vector<8x1xf32>
    %85 = arith.addf %81, %84 : vector<8x1xf32>
    %86 = math.rsqrt %85 : vector<8x1xf32>
    %87 = vector.broadcast %86 : vector<8x1xf32> to vector<8x128xf32>
    %88 = arith.mulf %83, %87 : vector<8x128xf32>
    %89 = vector.broadcast %7 : vector<1x128xf32> to vector<8x128xf32>
    %90 = arith.mulf %88, %89 : vector<8x128xf32>
    %91 = vector.broadcast %8 : vector<1x128xf32> to vector<8x128xf32>
    %92 = arith.addf %90, %91 : vector<8x128xf32>
    %93 = tpu.concatenate %50, %92 in 0 : vector<8x128xf32>, vector<8x128xf32> -> vector<16x128xf32>
    %cst_32 = arith.constant dense<0.000000e+00> : vector<16x16xf32>
    %94 = tpu.matmul %93, %93, %cst_32 {dimension_numbers = #tpu.dot_dimension_numbers<[1], [1], [0], [0], [0, 0, 1, 0], [], []>} : vector<16x128xf32>, vector<16x128xf32>, vector<16x16xf32> -> vector<16x16xf32>
    %95 = vector.extract_strided_slice %94 {offsets = [0, 0], sizes = [8, 8], strides = [1, 1]} : vector<16x16xf32> to vector<8x8xf32>
    %96 = vector.extract_strided_slice %94 {offsets = [8, 8], sizes = [8, 8], strides = [1, 1]} : vector<16x16xf32> to vector<8x8xf32>
    %97 = vector.extract_strided_slice %94 {offsets = [8, 0], sizes = [8, 8], strides = [1, 1]} : vector<16x16xf32> to vector<8x8xf32>
    %98 = arith.addf %95, %96 : vector<8x8xf32>
    %cst_33 = arith.constant 5.000000e-01 : f32
    %99 = vector.broadcast %cst_33 : f32 to vector<8x8xf32>
    %100 = arith.mulf %98, %99 : vector<8x8xf32>
    %cst_34 = arith.constant dense<0xFF800000> : vector<8xf32>
    %101 = vector.multi_reduction <maximumf>, %100, %cst_34 [1] : vector<8x8xf32> to vector<8xf32>
    %102 = vector.shape_cast %101 : vector<8xf32> to vector<8x1xf32>
    %103 = vector.broadcast %102 : vector<8x1xf32> to vector<8x8xf32>
    %104 = arith.subf %100, %103 : vector<8x8xf32>
    %105 = math.exp %104 : vector<8x8xf32>
    %cst_35 = arith.constant dense<0.000000e+00> : vector<8xf32>
    %106 = vector.multi_reduction <add>, %105, %cst_35 [1] : vector<8x8xf32> to vector<8xf32>
    %107 = vector.shape_cast %106 : vector<8xf32> to vector<8x1xf32>
    %108 = tpu.reciprocal %107 : vector<8x1xf32> -> vector<8x1xf32>
    %109 = vector.broadcast %108 : vector<8x1xf32> to vector<8x8xf32>
    %110 = arith.mulf %105, %109 : vector<8x8xf32>
    %cst_36 = arith.constant dense<0xFF800000> : vector<8xf32>
    %111 = vector.multi_reduction <maximumf>, %97, %cst_36 [1] : vector<8x8xf32> to vector<8xf32>
    %112 = vector.shape_cast %111 : vector<8xf32> to vector<8x1xf32>
    %113 = vector.broadcast %112 : vector<8x1xf32> to vector<8x8xf32>
    %114 = arith.subf %97, %113 : vector<8x8xf32>
    %115 = math.exp %114 : vector<8x8xf32>
    %cst_37 = arith.constant dense<0.000000e+00> : vector<8xf32>
    %116 = vector.multi_reduction <add>, %115, %cst_37 [1] : vector<8x8xf32> to vector<8xf32>
    %117 = vector.shape_cast %116 : vector<8xf32> to vector<8x1xf32>
    %118 = math.log %117 : vector<8x1xf32>
    %119 = vector.broadcast %118 : vector<8x1xf32> to vector<8x8xf32>
    %120 = arith.subf %114, %119 : vector<8x8xf32>
    %cst_38 = arith.constant dense<0xFF800000> : vector<8xf32>
    %121 = vector.multi_reduction <maximumf>, %97, %cst_38 [0] : vector<8x8xf32> to vector<8xf32>
    %122 = vector.shape_cast %121 : vector<8xf32> to vector<1x8xf32>
    %123 = vector.broadcast %122 : vector<1x8xf32> to vector<8x8xf32>
    %124 = arith.subf %97, %123 : vector<8x8xf32>
    %125 = math.exp %124 : vector<8x8xf32>
    %cst_39 = arith.constant dense<0.000000e+00> : vector<8xf32>
    %126 = vector.multi_reduction <add>, %125, %cst_39 [0] : vector<8x8xf32> to vector<8xf32>
    %127 = vector.shape_cast %126 : vector<8xf32> to vector<1x8xf32>
    %128 = math.log %127 : vector<1x8xf32>
    %129 = vector.broadcast %128 : vector<1x8xf32> to vector<8x8xf32>
    %130 = arith.subf %124, %129 : vector<8x8xf32>
    %cst_40 = arith.constant 0.000000e+00 : f32
    %131 = vector.broadcast %cst_40 : f32 to vector<8x8xf32>
    %132 = arith.subf %131, %110 : vector<8x8xf32>
    %133 = arith.addf %120, %130 : vector<8x8xf32>
    %134 = arith.mulf %132, %133 : vector<8x8xf32>
    %135 = vector.shape_cast %134 : vector<8x8xf32> to vector<1x8x8xf32>
    %cst_41 = arith.constant dense<0.000000e+00> : vector<1xf32>
    %136 = vector.multi_reduction <add>, %135, %cst_41 [1, 2] : vector<1x8x8xf32> to vector<1xf32>
    %137 = vector.shape_cast %136 : vector<1xf32> to vector<1x1x1xf32>
    %138 = vector.extract %137[0, 0, 0] : f32 from vector<1x1x1xf32>
    %cst_42 = arith.constant 6.250000e-02 : f32
    %139 = arith.mulf %138, %cst_42 : f32
    %c0_43 = arith.constant 0 : index
    %c0_44 = arith.constant 0 : index
    %140 = memref.load %arg7[%c0_43, %c0_44] : memref<1x1xf32, #tpu.memory_space<smem>>
    memref.store %139, %arg7[%c0_43, %c0_44] : memref<1x1xf32, #tpu.memory_space<smem>>
    return
  }
}

</mosaic_0001>

<llo_original>
// kernel: clip_loss.1
$region0: #{clip_loss.1}
  #allocation0 [shape = 'u32[]', space=smem, size = 0x4, offset = 0x4, fixed_abs, tag = 'smem constant byte address 0x4 - core index']
  #allocation1 [shape = 'u32[144,128]{1,0:T(1,128)}', space=vmem, size = 0x12000, scoped, tag = 'internal scratch']
  %s0 = inlined_call_operand.vmem [shape: f32[8,256], index: 0, kind: input, shape index: {}]
  %s1 = inlined_call_operand.hbm [shape: f32[8,128], index: 1, kind: input, shape index: {}]
  %s2 = inlined_call_operand.hbm [shape: f32[256,128], index: 2, kind: input, shape index: {}]
  %s3 = inlined_call_operand.hbm [shape: f32[128,128], index: 3, kind: input, shape index: {}]
  %s4 = inlined_call_operand.hbm [shape: f32[128,128], index: 4, kind: input, shape index: {}]
  %s5 = inlined_call_operand.hbm [shape: f32[128,128], index: 5, kind: input, shape index: {}]
  %s6 = inlined_call_operand.vmem [shape: f32[8,128], index: 6, kind: input, shape index: {}]
  %s7 = inlined_call_operand.hbm [shape: f32[1,1], index: 7, kind: output, shape index: {}]
  %s8 = sld [smem:[#allocation0]]
  $region58: #{clip_loss.1} parent=0
    _
  %s10 = ssub.s32 1, %s8
  %s11 = scalar_select 0, %s10, %s8
  $region1: #{clip_loss.1} parent=0
    #allocation2 [shape = 'u8[4096]{0}', space=vmem, size = 0x1000, scoped, tag = 'input window, operand 1, single buffered']
    #allocation3 [shape = 's32[1]{0}', space=sflag, size = 0x4, scoped, tag = 'scoped memory for clip_loss.1']
    #allocation4 [shape = 's32[1]{0}', space=sflag, size = 0x4, scoped, tag = 'scoped memory for clip_loss.1']
    #allocation5 [shape = 'u8[131072]{0}', space=vmem, size = 0x20000, scoped, tag = 'input window, operand 2, single buffered']
    #allocation6 [shape = 's32[1]{0}', space=sflag, size = 0x4, scoped, tag = 'scoped memory for clip_loss.1']
    #allocation7 [shape = 'u8[65536]{0}', space=vmem, size = 0x10000, scoped, tag = 'input window, operand 3, single buffered']
    #allocation8 [shape = 'u8[65536]{0}', space=vmem, size = 0x10000, scoped, tag = 'input window, operand 4, single buffered']
    #allocation9 [shape = 's32[1]{0}', space=sflag, size = 0x4, scoped, tag = 'scoped memory for clip_loss.1']
    #allocation10 [shape = 'u8[65536]{0}', space=vmem, size = 0x10000, scoped, tag = 'input window, operand 5, single buffered']
    #allocation11 [shape = 'u8[512]{0}', space=smem, size = 0x200, scoped, tag = 'output window, operand 0, single buffered']
    %12 = vsyncpa [#allocation3], 0
    %13 = vsyncpa [#allocation6], 0
    %14 = vsyncpa [#allocation9], 0
    %15 = vsyncpa [#allocation4], 0
    // Predicated region
    $region2: #{clip_loss.1} parent=1 // pred_check
      _
    $region3: #{clip_loss.1} parent=1 // pred_check_branch
      %17 = sbr.rel (0) target = $region5
    $region4: #{clip_loss.1} parent=1 // pred_region
      _
    $region5: #{clip_loss.1} parent=1 // pred_fallthru
      _
    // Predicated region
    $region6: #{clip_loss.1} parent=1 // pred_check
      _
    $region7: #{clip_loss.1} parent=1 // pred_check_branch
      %19 = sbr.rel (0) target = $region9
    $region8: #{clip_loss.1} parent=1 // pred_region
      %s21 = ssub.s32 128, 128
      %22 = vsyncadd [#allocation3], %s21
      %s24 = sshll.u32 [#allocation2], 4
      %s25 = int_to_ptr.vmem [resolvable:$true] %s24
      %27 = dma.hbm_to_vmem [thread:$0]  %s1, 128, %s25, [#allocation3]
    $region9: #{clip_loss.1} parent=1 // pred_fallthru
      _
    // Predicated region
    $region10: #{clip_loss.1} parent=1 // pred_check
      _
    $region11: #{clip_loss.1} parent=1 // pred_check_branch
      %29 = sbr.rel (0) target = $region13
    $region12: #{clip_loss.1} parent=1 // pred_region
      %s31 = ssub.s32 4096, 4096
      %32 = vsyncadd [#allocation6], %s31
      %s33 = sshll.u32 [#allocation5], 4
      %s34 = int_to_ptr.vmem [resolvable:$true] %s33
      %39 = dma.hbm_to_vmem [thread:$0]  %s2, 4096, %s34, [#allocation6], 128, 128, 8
    $region13: #{clip_loss.1} parent=1 // pred_fallthru
      _
    // Predicated region
    $region14: #{clip_loss.1} parent=1 // pred_check
      _
    $region15: #{clip_loss.1} parent=1 // pred_check_branch
      %41 = sbr.rel (0) target = $region17
    $region16: #{clip_loss.1} parent=1 // pred_region
      %s43 = ssub.s32 2048, 2048
      %44 = vsyncadd [#allocation6], %s43
      %s45 = sshll.u32 [#allocation7], 4
      %s46 = int_to_ptr.vmem [resolvable:$true] %s45
      %51 = dma.hbm_to_vmem [thread:$0]  %s3, 2048, %s46, [#allocation6], 128, 128, 8
    $region17: #{clip_loss.1} parent=1 // pred_fallthru
      _
    // Predicated region
    $region18: #{clip_loss.1} parent=1 // pred_check
      _
    $region19: #{clip_loss.1} parent=1 // pred_check_branch
      %53 = sbr.rel (0) target = $region21
    $region20: #{clip_loss.1} parent=1 // pred_region
      %s55 = ssub.s32 2048, 2048
      %56 = vsyncadd [#allocation9], %s55
      %s57 = sshll.u32 [#allocation8], 4
      %s58 = int_to_ptr.vmem [resolvable:$true] %s57
      %63 = dma.hbm_to_vmem [thread:$0]  %s4, 2048, %s58, [#allocation9], 128, 128, 8
    $region21: #{clip_loss.1} parent=1 // pred_fallthru
      _
    // Predicated region
    $region22: #{clip_loss.1} parent=1 // pred_check
      _
    $region23: #{clip_loss.1} parent=1 // pred_check_branch
      %65 = sbr.rel (0) target = $region25
    $region24: #{clip_loss.1} parent=1 // pred_region
      %s67 = ssub.s32 2048, 2048
      %68 = vsyncadd [#allocation9], %s67
      %s69 = sshll.u32 [#allocation10], 4
      %s70 = int_to_ptr.vmem [resolvable:$true] %s69
      %75 = dma.hbm_to_vmem [thread:$0]  %s5, 2048, %s70, [#allocation9], 128, 128, 8
    $region25: #{clip_loss.1} parent=1 // pred_fallthru
      _
    // Predicated region
    $region26: #{clip_loss.1} parent=1 // pred_check
      _
    $region27: #{clip_loss.1} parent=1 // pred_check_branch
      %77 = sbr.rel (0) target = $region29
    $region28: #{clip_loss.1} parent=1 // pred_region
      _
    $region29: #{clip_loss.1} parent=1 // pred_fallthru
      _
    // Predicated region
    $region30: #{clip_loss.1} parent=1 // pred_check
      _
    $region31: #{clip_loss.1} parent=1 // pred_check_branch
      %79 = sbr.rel (0) target = $region33
    $region32: #{clip_loss.1} parent=1 // pred_region
      %80 = dma.done [#allocation3], 128
    $region33: #{clip_loss.1} parent=1 // pred_fallthru
      _
    // Predicated region
    $region34: #{clip_loss.1} parent=1 // pred_check
      _
    $region35: #{clip_loss.1} parent=1 // pred_check_branch
      %82 = sbr.rel (0) target = $region37
    $region36: #{clip_loss.1} parent=1 // pred_region
      %83 = dma.done [#allocation6], 4096
    $region37: #{clip_loss.1} parent=1 // pred_fallthru
      _
    // Predicated region
    $region38: #{clip_loss.1} parent=1 // pred_check
      _
    $region39: #{clip_loss.1} parent=1 // pred_check_branch
      %85 = sbr.rel (0) target = $region41
    $region40: #{clip_loss.1} parent=1 // pred_region
      %86 = dma.done [#allocation6], 2048
    $region41: #{clip_loss.1} parent=1 // pred_fallthru
      _
    // Predicated region
    $region42: #{clip_loss.1} parent=1 // pred_check
      _
    $region43: #{clip_loss.1} parent=1 // pred_check_branch
      %88 = sbr.rel (0) target = $region45
    $region44: #{clip_loss.1} parent=1 // pred_region
      %89 = dma.done [#allocation9], 2048
    $region45: #{clip_loss.1} parent=1 // pred_fallthru
      _
    // Predicated region
    $region46: #{clip_loss.1} parent=1 // pred_check
      _
    $region47: #{clip_loss.1} parent=1 // pred_check_branch
      %91 = sbr.rel (0) target = $region49
    $region48: #{clip_loss.1} parent=1 // pred_region
      %92 = dma.done [#allocation9], 2048
    $region49: #{clip_loss.1} parent=1 // pred_fallthru
      _
    %v93 = vld [vmem:[%s6] sm:$0xff]
    %v94 = vld [vmem:[%s0] sm:$0xff]
    %v95 = vld [vmem:[%s0 + $0x8] sm:$0xff]
    %v96 = vld [vmem:[#allocation5] sm:$0xff]
    %v97 = vld [vmem:[#allocation5 + $0x8] sm:$0xff]
    %v98 = vld [vmem:[#allocation5 + $0x10] sm:$0xff]
    %v99 = vld [vmem:[#allocation5 + $0x18] sm:$0xff]
    %v100 = vld [vmem:[#allocation5 + $0x20] sm:$0xff]
    %v101 = vld [vmem:[#allocation5 + $0x28] sm:$0xff]
    %v102 = vld [vmem:[#allocation5 + $0x30] sm:$0xff]
    %v103 = vld [vmem:[#allocation5 + $0x38] sm:$0xff]
    %v104 = vld [vmem:[#allocation5 + $0x40] sm:$0xff]
    %v105 = vld [vmem:[#allocation5 + $0x48] sm:$0xff]
    %v106 = vld [vmem:[#allocation5 + $0x50] sm:$0xff]
    %v107 = vld [vmem:[#allocation5 + $0x58] sm:$0xff]
    %v108 = vld [vmem:[#allocation5 + $0x60] sm:$0xff]
    %v109 = vld [vmem:[#allocation5 + $0x68] sm:$0xff]
    %v110 = vld [vmem:[#allocation5 + $0x70] sm:$0xff]
    %v111 = vld [vmem:[#allocation5 + $0x78] sm:$0xff]
    %v112 = vld [vmem:[#allocation5 + $0x80] sm:$0xff]
    %v113 = vld [vmem:[#allocation5 + $0x88] sm:$0xff]
    %v114 = vld [vmem:[#allocation5 + $0x90] sm:$0xff]
    %v115 = vld [vmem:[#allocation5 + $0x98] sm:$0xff]
    %v116 = vld [vmem:[#allocation5 + $0xa0] sm:$0xff]
    %v117 = vld [vmem:[#allocation5 + $0xa8] sm:$0xff]
    %v118 = vld [vmem:[#allocation5 + $0xb0] sm:$0xff]
    %v119 = vld [vmem:[#allocation5 + $0xb8] sm:$0xff]
    %v120 = vld [vmem:[#allocation5 + $0xc0] sm:$0xff]
    %v121 = vld [vmem:[#allocation5 + $0xc8] sm:$0xff]
    %v122 = vld [vmem:[#allocation5 + $0xd0] sm:$0xff]
    %v123 = vld [vmem:[#allocation5 + $0xd8] sm:$0xff]
    %v124 = vld [vmem:[#allocation5 + $0xe0] sm:$0xff]
    %v125 = vld [vmem:[#allocation5 + $0xe8] sm:$0xff]
    %v126 = vld [vmem:[#allocation5 + $0xf0] sm:$0xff]
    %v127 = vld [vmem:[#allocation5 + $0xf8] sm:$0xff]
    %v128 = vld [vmem:[#allocation7] sm:$0xff]
    %v129 = vld [vmem:[#allocation7 + $0x8] sm:$0xff]
    %v130 = vld [vmem:[#allocation7 + $0x10] sm:$0xff]
    %v131 = vld [vmem:[#allocation7 + $0x18] sm:$0xff]
    %v132 = vld [vmem:[#allocation7 + $0x20] sm:$0xff]
    %v133 = vld [vmem:[#allocation7 + $0x28] sm:$0xff]
    %v134 = vld [vmem:[#allocation7 + $0x30] sm:$0xff]
    %v135 = vld [vmem:[#allocation7 + $0x38] sm:$0xff]
    %v136 = vld [vmem:[#allocation7 + $0x40] sm:$0xff]
    %v137 = vld [vmem:[#allocation7 + $0x48] sm:$0xff]
    %v138 = vld [vmem:[#allocation7 + $0x50] sm:$0xff]
    %v139 = vld [vmem:[#allocation7 + $0x58] sm:$0xff]
    %v140 = vld [vmem:[#allocation7 + $0x60] sm:$0xff]
    %v141 = vld [vmem:[#allocation7 + $0x68] sm:$0xff]
    %v142 = vld [vmem:[#allocation7 + $0x70] sm:$0xff]
    %v143 = vld [vmem:[#allocation7 + $0x78] sm:$0xff]
    %v144 = vlaneseq
    %v145 = vshrl.u32 %v144, 7
    %v146 = vsub.s32 0, %v145
    %v147 = vrot.slane %v93, %v146
    %148 = vmatprep.subr.mxu0 0.0
    %149 = vmatpush1.msra.mxu0 %v96
    %150 = vmatprep.subr.mxu0 0.0
    %151 = vmatpush1.msra.mxu0 %v97
    %152 = vmatprep.subr.mxu0 0.0
    %153 = vmatpush1.msra.mxu0 %v98
    %154 = vmatprep.subr.mxu0 0.0
    %155 = vmatpush1.msra.mxu0 %v99
    %156 = vmatprep.subr.mxu0 0.0
    %157 = vmatpush1.msra.mxu0 %v100
    %158 = vmatprep.subr.mxu0 0.0
    %159 = vmatpush1.msra.mxu0 %v101
    %160 = vmatprep.subr.mxu0 0.0
    %161 = vmatpush1.msra.mxu0 %v102
    %162 = vmatprep.subr.mxu0 0.0
    %163 = vmatpush1.msra.mxu0 %v103
    %164 = vmatprep.subr.mxu0 0.0
    %165 = vmatpush1.msra.mxu0 %v104
    %166 = vmatprep.subr.mxu0 0.0
    %167 = vmatpush1.msra.mxu0 %v105
    %168 = vmatprep.subr.mxu0 0.0
    %169 = vmatpush1.msra.mxu0 %v106
    %170 = vmatprep.subr.mxu0 0.0
    %171 = vmatpush1.msra.mxu0 %v107
    %172 = vmatprep.subr.mxu0 0.0
    %173 = vmatpush1.msra.mxu0 %v108
    %174 = vmatprep.subr.mxu0 0.0
    %175 = vmatpush1.msra.mxu0 %v109
    %176 = vmatprep.subr.mxu0 0.0
    %177 = vmatpush1.msra.mxu0 %v110
    %178 = vmatprep.subr.mxu0 0.0
    %179 = vmatpush1.msra.mxu0 %v111
    %180 = vmatprep.subr.mxu0 0.0
    %181 = vmatpush1.msra.mxu0 %v112
    %182 = vmatprep.subr.mxu0 0.0
    %183 = vmatpush1.msra.mxu0 %v113
    %184 = vmatprep.subr.mxu0 0.0
    %185 = vmatpush1.msra.mxu0 %v114
    %186 = vmatprep.subr.mxu0 0.0
    %187 = vmatpush1.msra.mxu0 %v115
    %188 = vmatprep.subr.mxu0 0.0
    %189 = vmatpush1.msra.mxu0 %v116
    %190 = vmatprep.subr.mxu0 0.0
    %191 = vmatpush1.msra.mxu0 %v117
    %192 = vmatprep.subr.mxu0 0.0
    %193 = vmatpush1.msra.mxu0 %v118
    %194 = vmatprep.subr.mxu0 0.0
    %195 = vmatpush1.msra.mxu0 %v119
    %196 = vmatprep.subr.mxu0 0.0
    %197 = vmatpush1.msra.mxu0 %v120
    %198 = vmatprep.subr.mxu0 0.0
    %199 = vmatpush1.msra.mxu0 %v121
    %200 = vmatprep.subr.mxu0 0.0
    %201 = vmatpush1.msra.mxu0 %v122
    %202 = vmatprep.subr.mxu0 0.0
    %203 = vmatpush1.msra.mxu0 %v123
    %204 = vmatprep.subr.mxu0 0.0
    %205 = vmatpush1.msra.mxu0 %v124
    %206 = vmatprep.subr.mxu0 0.0
    %207 = vmatpush1.msra.mxu0 %v125
    %208 = vmatprep.subr.mxu0 0.0
    %209 = vmatpush1.msra.mxu0 %v126
    %210 = vmatprep.subr.mxu0 0.0
    %211 = vmatpush1.msra.mxu0 %v127
    %212 = vmatprep.mubr.f32.mxu0 %v95
    %213 = vmatmul.mubr.f32.gmra.mrb[0].mxu0 %v94
    %v214 = vpop.f32.mrb[0].mxu0
    %v215 = vadd.f32 %v147, %v214
    %v216 = vpop.f32.mrb[0].mxu0
    %217 = vdwg.mxu0
    %v218 = vmul.f32 %v215, 0.5
    %v219 = vmul.f32 %v215, 0.70710677
    %v220 = verf.f32.pop %v219
    %v221 = vadd.f32 %v220, 1.0
    %v222 = vmul.f32 %v218, %v221
    %v223 = vlaneseq
    %v224 = vshrl.u32 %v223, 7
    %v225 = vsub.s32 1, %v224
    %v226 = vrot.slane %v93, %v225
    %227 = vmatprep.subr.mxu0 0.0
    %228 = vmatpush1.msra.mxu0 %v128
    %229 = vmatprep.subr.mxu0 0.0
    %230 = vmatpush1.msra.mxu0 %v129
    %231 = vmatprep.subr.mxu0 0.0
    %232 = vmatpush1.msra.mxu0 %v130
    %233 = vmatprep.subr.mxu0 0.0
    %234 = vmatpush1.msra.mxu0 %v131
    %235 = vmatprep.subr.mxu0 0.0
    %236 = vmatpush1.msra.mxu0 %v132
    %237 = vmatprep.subr.mxu0 0.0
    %238 = vmatpush1.msra.mxu0 %v133
    %239 = vmatprep.subr.mxu0 0.0
    %240 = vmatpush1.msra.mxu0 %v134
    %241 = vmatprep.subr.mxu0 0.0
    %242 = vmatpush1.msra.mxu0 %v135
    %243 = vmatprep.subr.mxu0 0.0
    %244 = vmatpush1.msra.mxu0 %v136
    %245 = vmatprep.subr.mxu0 0.0
    %246 = vmatpush1.msra.mxu0 %v137
    %247 = vmatprep.subr.mxu0 0.0
    %248 = vmatpush1.msra.mxu0 %v138
    %249 = vmatprep.subr.mxu0 0.0
    %250 = vmatpush1.msra.mxu0 %v139
    %251 = vmatprep.subr.mxu0 0.0
    %252 = vmatpush1.msra.mxu0 %v140
    %253 = vmatprep.subr.mxu0 0.0
    %254 = vmatpush1.msra.mxu0 %v141
    %255 = vmatprep.subr.mxu0 0.0
    %256 = vmatpush1.msra.mxu0 %v142
    %257 = vmatprep.subr.mxu0 0.0
    %258 = vmatpush1.msra.mxu0 %v143
    %259 = vmatprep.subr.mxu0 0.0
    %260 = vmatpush1.msra.mxu0 0.0
    %261 = vmatprep.subr.mxu0 0.0
    %262 = vmatpush1.msra.mxu0 0.0
    %263 = vmatprep.subr.mxu0 0.0
    %264 = vmatpush1.msra.mxu0 0.0
    %265 = vmatprep.subr.mxu0 0.0
    %266 = vmatpush1.msra.mxu0 0.0
    %267 = vmatprep.subr.mxu0 0.0
    %268 = vmatpush1.msra.mxu0 0.0
    %269 = vmatprep.subr.mxu0 0.0
    %270 = vmatpush1.msra.mxu0 0.0
    %271 = vmatprep.subr.mxu0 0.0
    %272 = vmatpush1.msra.mxu0 0.0
    %273 = vmatprep.subr.mxu0 0.0
    %274 = vmatpush1.msra.mxu0 0.0
    %275 = vmatprep.subr.mxu0 0.0
    %276 = vmatpush1.msra.mxu0 0.0
    %277 = vmatprep.subr.mxu0 0.0
    %278 = vmatpush1.msra.mxu0 0.0
    %279 = vmatprep.subr.mxu0 0.0
    %280 = vmatpush1.msra.mxu0 0.0
    %281 = vmatprep.subr.mxu0 0.0
    %282 = vmatpush1.msra.mxu0 0.0
    %283 = vmatprep.subr.mxu0 0.0
    %284 = vmatpush1.msra.mxu0 0.0
    %285 = vmatprep.subr.mxu0 0.0
    %286 = vmatpush1.msra.mxu0 0.0
    %287 = vmatprep.subr.mxu0 0.0
    %288 = vmatpush1.msra.mxu0 0.0
    %289 = vmatprep.subr.mxu0 0.0
    %290 = vmatpush1.msra.mxu0 0.0
    %291 = vmatprep.mubr.f32.mxu0 0.0
    %292 = vmatmul.mubr.f32.gmra.mrb[0].mxu0 %v222
    %v293 = vpop.f32.mrb[0].mxu0
    %v294 = vadd.f32 %v226, %v293
    %v295 = vpop.f32.mrb[0].mxu0
    %296 = vdwg.mxu0
    %v297 = vadd.f32 %v294, %v215
    %298 = vadd.xlane.f32.xlu0 %v297
    %v299 = vpop.xlane.xlu0 %298
    %v300 = vrcp.pop 128.0
    %v301 = vmul.f32 %v299, %v300
    %v302 = vsub.f32 %v297, %v301
    %v303 = vmul.f32 %v302, %v302
    %304 = vadd.xlane.f32.xlu0 %v303
    %v305 = vpop.xlane.xlu0 %304
    %v306 = vmul.f32 %v305, %v300
    %v307 = vadd.f32 %v306, 1e-05
    %v308 = vrsqrt.pop %v307
    %v309 = vmul.f32 %v302, %v308
    %v310 = vlaneseq
    %v311 = vshrl.u32 %v310, 7
    %v312 = vsub.s32 2, %v311
    %v313 = vrot.slane %v93, %v312
    %v314 = vmul.f32 %v309, %v313
    %v315 = vlaneseq
    %v316 = vshrl.u32 %v315, 7
    %v317 = vsub.s32 3, %v316
    %v318 = vrot.slane %v93, %v317
    %v319 = vadd.f32 %v314, %v318
    %v320 = vld [vmem:[#allocation2] sm:$0xff]
    %v321 = vld [vmem:[#allocation8] sm:$0xff]
    %v322 = vld [vmem:[#allocation8 + $0x8] sm:$0xff]
    %v323 = vld [vmem:[#allocation8 + $0x10] sm:$0xff]
    %v324 = vld [vmem:[#allocation8 + $0x18] sm:$0xff]
    %v325 = vld [vmem:[#allocation8 + $0x20] sm:$0xff]
    %v326 = vld [vmem:[#allocation8 + $0x28] sm:$0xff]
    %v327 = vld [vmem:[#allocation8 + $0x30] sm:$0xff]
    %v328 = vld [vmem:[#allocation8 + $0x38] sm:$0xff]
    %v329 = vld [vmem:[#allocation8 + $0x40] sm:$0xff]
    %v330 = vld [vmem:[#allocation8 + $0x48] sm:$0xff]
    %v331 = vld [vmem:[#allocation8 + $0x50] sm:$0xff]
    %v332 = vld [vmem:[#allocation8 + $0x58] sm:$0xff]
    %v333 = vld [vmem:[#allocation8 + $0x60] sm:$0xff]
    %v334 = vld [vmem:[#allocation8 + $0x68] sm:$0xff]
    %v335 = vld [vmem:[#allocation8 + $0x70] sm:$0xff]
    %v336 = vld [vmem:[#allocation8 + $0x78] sm:$0xff]
    %v337 = vld [vmem:[#allocation10] sm:$0xff]
    %v338 = vld [vmem:[#allocation10 + $0x8] sm:$0xff]
    %v339 = vld [vmem:[#allocation10 + $0x10] sm:$0xff]
    %v340 = vld [vmem:[#allocation10 + $0x18] sm:$0xff]
    %v341 = vld [vmem:[#allocation10 + $0x20] sm:$0xff]
    %v342 = vld [vmem:[#allocation10 + $0x28] sm:$0xff]
    %v343 = vld [vmem:[#allocation10 + $0x30] sm:$0xff]
    %v344 = vld [vmem:[#allocation10 + $0x38] sm:$0xff]
    %v345 = vld [vmem:[#allocation10 + $0x40] sm:$0xff]
    %v346 = vld [vmem:[#allocation10 + $0x48] sm:$0xff]
    %v347 = vld [vmem:[#allocation10 + $0x50] sm:$0xff]
    %v348 = vld [vmem:[#allocation10 + $0x58] sm:$0xff]
    %v349 = vld [vmem:[#allocation10 + $0x60] sm:$0xff]
    %v350 = vld [vmem:[#allocation10 + $0x68] sm:$0xff]
    %v351 = vld [vmem:[#allocation10 + $0x70] sm:$0xff]
    %v352 = vld [vmem:[#allocation10 + $0x78] sm:$0xff]
    %v353 = vlaneseq
    %v354 = vshrl.u32 %v353, 7
    %v355 = vsub.s32 4, %v354
    %v356 = vrot.slane %v93, %v355
    %357 = vmatprep.subr.mxu0 0.0
    %358 = vmatpush1.msra.mxu0 %v321
    %359 = vmatprep.subr.mxu0 0.0
    %360 = vmatpush1.msra.mxu0 %v322
    %361 = vmatprep.subr.mxu0 0.0
    %362 = vmatpush1.msra.mxu0 %v323
    %363 = vmatprep.subr.mxu0 0.0
    %364 = vmatpush1.msra.mxu0 %v324
    %365 = vmatprep.subr.mxu0 0.0
    %366 = vmatpush1.msra.mxu0 %v325
    %367 = vmatprep.subr.mxu0 0.0
    %368 = vmatpush1.msra.mxu0 %v326
    %369 = vmatprep.subr.mxu0 0.0
    %370 = vmatpush1.msra.mxu0 %v327
    %371 = vmatprep.subr.mxu0 0.0
    %372 = vmatpush1.msra.mxu0 %v328
    %373 = vmatprep.subr.mxu0 0.0
    %374 = vmatpush1.msra.mxu0 %v329
    %375 = vmatprep.subr.mxu0 0.0
    %376 = vmatpush1.msra.mxu0 %v330
    %377 = vmatprep.subr.mxu0 0.0
    %378 = vmatpush1.msra.mxu0 %v331
    %379 = vmatprep.subr.mxu0 0.0
    %380 = vmatpush1.msra.mxu0 %v332
    %381 = vmatprep.subr.mxu0 0.0
    %382 = vmatpush1.msra.mxu0 %v333
    %383 = vmatprep.subr.mxu0 0.0
    %384 = vmatpush1.msra.mxu0 %v334
    %385 = vmatprep.subr.mxu0 0.0
    %386 = vmatpush1.msra.mxu0 %v335
    %387 = vmatprep.subr.mxu0 0.0
    %388 = vmatpush1.msra.mxu0 %v336
    %389 = vmatprep.subr.mxu0 0.0
    %390 = vmatpush1.msra.mxu0 0.0
    %391 = vmatprep.subr.mxu0 0.0
    %392 = vmatpush1.msra.mxu0 0.0
    %393 = vmatprep.subr.mxu0 0.0
    %394 = vmatpush1.msra.mxu0 0.0
    %395 = vmatprep.subr.mxu0 0.0
    %396 = vmatpush1.msra.mxu0 0.0
    %397 = vmatprep.subr.mxu0 0.0
    %398 = vmatpush1.msra.mxu0 0.0
    %399 = vmatprep.subr.mxu0 0.0
    %400 = vmatpush1.msra.mxu0 0.0
    %401 = vmatprep.subr.mxu0 0.0
    %402 = vmatpush1.msra.mxu0 0.0
    %403 = vmatprep.subr.mxu0 0.0
    %404 = vmatpush1.msra.mxu0 0.0
    %405 = vmatprep.subr.mxu0 0.0
    %406 = vmatpush1.msra.mxu0 0.0
    %407 = vmatprep.subr.mxu0 0.0
    %408 = vmatpush1.msra.mxu0 0.0
    %409 = vmatprep.subr.mxu0 0.0
    %410 = vmatpush1.msra.mxu0 0.0
    %411 = vmatprep.subr.mxu0 0.0
    %412 = vmatpush1.msra.mxu0 0.0
    %413 = vmatprep.subr.mxu0 0.0
    %414 = vmatpush1.msra.mxu0 0.0
    %415 = vmatprep.subr.mxu0 0.0
    %416 = vmatpush1.msra.mxu0 0.0
    %417 = vmatprep.subr.mxu0 0.0
    %418 = vmatpush1.msra.mxu0 0.0
    %419 = vmatprep.subr.mxu0 0.0
    %420 = vmatpush1.msra.mxu0 0.0
    %421 = vmatprep.mubr.f32.mxu0 0.0
    %422 = vmatmul.mubr.f32.gmra.mrb[0].mxu0 %v320
    %v423 = vpop.f32.mrb[0].mxu0
    %v424 = vadd.f32 %v356, %v423
    %v425 = vpop.f32.mrb[0].mxu0
    %426 = vdwg.mxu0
    %v427 = vmul.f32 %v424, 0.5
    %v428 = vmul.f32 %v424, 0.70710677
    %v429 = verf.f32.pop %v428
    %v430 = vadd.f32 %v429, 1.0
    %v431 = vmul.f32 %v427, %v430
    %v432 = vlaneseq
    %v433 = vshrl.u32 %v432, 7
    %v434 = vsub.s32 5, %v433
    %v435 = vrot.slane %v93, %v434
    %436 = vmatprep.subr.mxu0 0.0
    %437 = vmatpush1.msra.mxu0 %v337
    %438 = vmatprep.subr.mxu0 0.0
    %439 = vmatpush1.msra.mxu0 %v338
    %440 = vmatprep.subr.mxu0 0.0
    %441 = vmatpush1.msra.mxu0 %v339
    %442 = vmatprep.subr.mxu0 0.0
    %443 = vmatpush1.msra.mxu0 %v340
    %444 = vmatprep.subr.mxu0 0.0
    %445 = vmatpush1.msra.mxu0 %v341
    %446 = vmatprep.subr.mxu0 0.0
    %447 = vmatpush1.msra.mxu0 %v342
    %448 = vmatprep.subr.mxu0 0.0
    %449 = vmatpush1.msra.mxu0 %v343
    %450 = vmatprep.subr.mxu0 0.0
    %451 = vmatpush1.msra.mxu0 %v344
    %452 = vmatprep.subr.mxu0 0.0
    %453 = vmatpush1.msra.mxu0 %v345
    %454 = vmatprep.subr.mxu0 0.0
    %455 = vmatpush1.msra.mxu0 %v346
    %456 = vmatprep.subr.mxu0 0.0
    %457 = vmatpush1.msra.mxu0 %v347
    %458 = vmatprep.subr.mxu0 0.0
    %459 = vmatpush1.msra.mxu0 %v348
    %460 = vmatprep.subr.mxu0 0.0
    %461 = vmatpush1.msra.mxu0 %v349
    %462 = vmatprep.subr.mxu0 0.0
    %463 = vmatpush1.msra.mxu0 %v350
    %464 = vmatprep.subr.mxu0 0.0
    %465 = vmatpush1.msra.mxu0 %v351
    %466 = vmatprep.subr.mxu0 0.0
    %467 = vmatpush1.msra.mxu0 %v352
    %468 = vmatprep.subr.mxu0 0.0
    %469 = vmatpush1.msra.mxu0 0.0
    %470 = vmatprep.subr.mxu0 0.0
    %471 = vmatpush1.msra.mxu0 0.0
    %472 = vmatprep.subr.mxu0 0.0
    %473 = vmatpush1.msra.mxu0 0.0
    %474 = vmatprep.subr.mxu0 0.0
    %475 = vmatpush1.msra.mxu0 0.0
    %476 = vmatprep.subr.mxu0 0.0
    %477 = vmatpush1.msra.mxu0 0.0
    %478 = vmatprep.subr.mxu0 0.0
    %479 = vmatpush1.msra.mxu0 0.0
    %480 = vmatprep.subr.mxu0 0.0
    %481 = vmatpush1.msra.mxu0 0.0
    %482 = vmatprep.subr.mxu0 0.0
    %483 = vmatpush1.msra.mxu0 0.0
    %484 = vmatprep.subr.mxu0 0.0
    %485 = vmatpush1.msra.mxu0 0.0
    %486 = vmatprep.subr.mxu0 0.0
    %487 = vmatpush1.msra.mxu0 0.0
    %488 = vmatprep.subr.mxu0 0.0
    %489 = vmatpush1.msra.mxu0 0.0
    %490 = vmatprep.subr.mxu0 0.0
    %491 = vmatpush1.msra.mxu0 0.0
    %492 = vmatprep.subr.mxu0 0.0
    %493 = vmatpush1.msra.mxu0 0.0
    %494 = vmatprep.subr.mxu0 0.0
    %495 = vmatpush1.msra.mxu0 0.0
    %496 = vmatprep.subr.mxu0 0.0
    %497 = vmatpush1.msra.mxu0 0.0
    %498 = vmatprep.subr.mxu0 0.0
    %499 = vmatpush1.msra.mxu0 0.0
    %500 = vmatprep.mubr.f32.mxu0 0.0
    %501 = vmatmul.mubr.f32.gmra.mrb[0].mxu0 %v431
    %v502 = vpop.f32.mrb[0].mxu0
    %v503 = vadd.f32 %v435, %v502
    %v504 = vpop.f32.mrb[0].mxu0
    %505 = vdwg.mxu0
    %v506 = vadd.f32 %v503, %v424
    %507 = vadd.xlane.f32.xlu0 %v506
    %v508 = vpop.xlane.xlu0 %507
    %v509 = vmul.f32 %v508, %v300
    %v510 = vsub.f32 %v506, %v509
    %v511 = vmul.f32 %v510, %v510
    %512 = vadd.xlane.f32.xlu0 %v511
    %v513 = vpop.xlane.xlu0 %512
    %v514 = vmul.f32 %v513, %v300
    %v515 = vadd.f32 %v514, 1e-05
    %v516 = vrsqrt.pop %v515
    %v517 = vmul.f32 %v510, %v516
    %v518 = vlaneseq
    %v519 = vshrl.u32 %v518, 7
    %v520 = vsub.s32 6, %v519
    %v521 = vrot.slane %v93, %v520
    %v522 = vmul.f32 %v517, %v521
    %v523 = vlaneseq
    %v524 = vshrl.u32 %v523, 7
    %v525 = vsub.s32 7, %v524
    %v526 = vrot.slane %v93, %v525
    %v527 = vadd.f32 %v522, %v526
    %528 = vmatprep.subr.mxu0 0.0
    %529 = vmatpush1.xpose.msra.mxu0 %v319
    %530 = vmatprep.subr.mxu0 0.0
    %531 = vmatpush1.xpose.msra.mxu0 %v527
    %532 = vmatprep.subr.mxu0 0.0
    %533 = vmatpush1.xpose.msra.mxu0 0.0
    %534 = vmatprep.subr.mxu0 0.0
    %535 = vmatpush1.xpose.msra.mxu0 0.0
    %536 = vmatprep.subr.mxu0 0.0
    %537 = vmatpush1.xpose.msra.mxu0 0.0
    %538 = vmatprep.subr.mxu0 0.0
    %539 = vmatpush1.xpose.msra.mxu0 0.0
    %540 = vmatprep.subr.mxu0 0.0
    %541 = vmatpush1.xpose.msra.mxu0 0.0
    %542 = vmatprep.subr.mxu0 0.0
    %543 = vmatpush1.xpose.msra.mxu0 0.0
    %544 = vmatprep.subr.mxu0 0.0
    %545 = vmatpush1.xpose.msra.mxu0 0.0
    %546 = vmatprep.subr.mxu0 0.0
    %547 = vmatpush1.xpose.msra.mxu0 0.0
    %548 = vmatprep.subr.mxu0 0.0
    %549 = vmatpush1.xpose.msra.mxu0 0.0
    %550 = vmatprep.subr.mxu0 0.0
    %551 = vmatpush1.xpose.msra.mxu0 0.0
    %552 = vmatprep.subr.mxu0 0.0
    %553 = vmatpush1.xpose.msra.mxu0 0.0
    %554 = vmatprep.subr.mxu0 0.0
    %555 = vmatpush1.xpose.msra.mxu0 0.0
    %556 = vmatprep.subr.mxu0 0.0
    %557 = vmatpush1.xpose.msra.mxu0 0.0
    %558 = vmatprep.subr.mxu0 0.0
    %559 = vmatpush1.xpose.msra.mxu0 0.0
    %560 = vmatprep.subr.mxu0 0.0
    %561 = vmatpush1.xpose.msra.mxu0 0.0
    %562 = vmatprep.subr.mxu0 0.0
    %563 = vmatpush1.xpose.msra.mxu0 0.0
    %564 = vmatprep.subr.mxu0 0.0
    %565 = vmatpush1.xpose.msra.mxu0 0.0
    %566 = vmatprep.subr.mxu0 0.0
    %567 = vmatpush1.xpose.msra.mxu0 0.0
    %568 = vmatprep.subr.mxu0 0.0
    %569 = vmatpush1.xpose.msra.mxu0 0.0
    %570 = vmatprep.subr.mxu0 0.0
    %571 = vmatpush1.xpose.msra.mxu0 0.0
    %572 = vmatprep.subr.mxu0 0.0
    %573 = vmatpush1.xpose.msra.mxu0 0.0
    %574 = vmatprep.subr.mxu0 0.0
    %575 = vmatpush1.xpose.msra.mxu0 0.0
    %576 = vmatprep.subr.mxu0 0.0
    %577 = vmatpush1.xpose.msra.mxu0 0.0
    %578 = vmatprep.subr.mxu0 0.0
    %579 = vmatpush1.xpose.msra.mxu0 0.0
    %580 = vmatprep.subr.mxu0 0.0
    %581 = vmatpush1.xpose.msra.mxu0 0.0
    %582 = vmatprep.subr.mxu0 0.0
    %583 = vmatpush1.xpose.msra.mxu0 0.0
    %584 = vmatprep.subr.mxu0 0.0
    %585 = vmatpush1.xpose.msra.mxu0 0.0
    %586 = vmatprep.subr.mxu0 0.0
    %587 = vmatpush1.xpose.msra.mxu0 0.0
    %588 = vmatprep.subr.mxu0 0.0
    %589 = vmatpush1.xpose.msra.mxu0 0.0
    %590 = vmatprep.subr.mxu0 0.0
    %591 = vmatpush1.xpose.msra.mxu0 0.0
    %592 = vmatprep.mubr.f32.mxu0 0.0
    %593 = vmatmul.mubr.f32.gmra.mrb[0].mxu0 %v319
    %v594 = vpop.f32.mrb[0].mxu0
    %v595 = vadd.f32 0.0, %v594
    %v596 = vpop.f32.mrb[0].mxu0
    %597 = vmatprep.mubr.f32.mxu0 0.0
    %598 = vmatmul.mubr.f32.gmra.mrb[0].mxu0 %v527
    %v599 = vpop.f32.mrb[0].mxu0
    %v600 = vadd.f32 0.0, %v599
    %v601 = vpop.f32.mrb[0].mxu0
    %602 = vdwg.mxu0
    %604 = vrot.lane.b32.xlu0 %v600, 120
    %v605 = vpop.permute.xlu0 %604
    %v607 = vadd.f32 %v595, %v605
    %v608 = vmul.f32 %v607, 0.5
    %vm609 = vcmask 64512
    %v610 = vsel %vm609, %v608, -inf
    %611 = vmax.xlane.f32.xlu0 %v610
    %v612 = vpop.xlane.xlu0 %611
    %v613 = vsub.f32 %v608, %v612
    %v614 = vmul.f32 %v613, 1.442695
    %v615 = vpow.pop %v614
    %v616 = vsel %vm609, %v615, 0.0
    %617 = vadd.xlane.f32.xlu0 %v616
    %v618 = vpop.xlane.xlu0 %617
    %v619 = vrcp.pop %v618
    %v620 = vmul.f32 %v615, %v619
    %v621 = vsel %vm609, %v600, -inf
    %622 = vmax.xlane.f32.xlu0 %v621
    %v623 = vpop.xlane.xlu0 %622
    %v624 = vsub.f32 %v600, %v623
    %v625 = vmul.f32 %v624, 1.442695
    %v626 = vpow.pop %v625
    %v627 = vsel %vm609, %v626, 0.0
    %628 = vadd.xlane.f32.xlu0 %v627
    %v629 = vpop.xlane.xlu0 %628
    %v630 = vlog2.pop %v629
    %v631 = vmul.f32 %v630, 0.6931472
    %v632 = vsub.f32 %v624, %v631
    %v633 = vrot.slane %v621, 4
    %v634 = vmax.f32 %v621, %v633
    %v635 = vrot.slane %v634, 2
    %v636 = vmax.f32 %v634, %v635
    %v637 = vrot.slane %v636, 1
    %v638 = vmax.f32 %v636, %v637
    %v639 = vsub.f32 %v600, %v638
    %v640 = vmul.f32 %v639, 1.442695
    %v641 = vpow.pop %v640
    %v642 = vsel %vm609, %v641, 0.0
    %v643 = vrot.slane %v642, 4
    %v644 = vadd.f32 %v642, %v643
    %v645 = vrot.slane %v644, 2
    %v646 = vadd.f32 %v644, %v645
    %v647 = vrot.slane %v646, 1
    %v648 = vadd.f32 %v646, %v647
    %v649 = vlog2.pop %v648
    %v650 = vmul.f32 %v649, 0.6931472
    %v651 = vsub.f32 %v639, %v650
    %v652 = vsub.f32 0.0, %v620
    %v653 = vadd.f32 %v632, %v651
    %v654 = vmul.f32 %v652, %v653
    %v655 = vsel %vm609, %v654, 0.0
    %656 = vadd.xlane.f32.xlu0 %v655
    %v657 = vpop.xlane.xlu0 %656
    %v658 = vrot.slane %v657, 4
    %v659 = vadd.f32 %v657, %v658
    %v660 = vrot.slane %v659, 2
    %v661 = vadd.f32 %v659, %v660
    %v662 = vrot.slane %v661, 1
    %v663 = vadd.f32 %v661, %v662
    %s664 = vtos %v663
    %s665 = smul.f32 %s664, 0.0625
    %s666 = scalar_lea.smem [#allocation11], 0
    %667 = sst [smem:[%s666]] %s665
    // Predicated region
    $region50: #{clip_loss.1} parent=1 // pred_check
      _
    $region51: #{clip_loss.1} parent=1 // pred_check_branch
      %669 = sbr.rel (0) target = $region53
    $region52: #{clip_loss.1} parent=1 // pred_region
      %s671 = ssub.s32 16, 16
      %672 = vsyncadd [#allocation4], %s671
      %675 = dma.smem_to_hbm [#allocation11], 16, %s7, [#allocation4]
    $region53: #{clip_loss.1} parent=1 // pred_fallthru
      _
    // Predicated region
    $region54: #{clip_loss.1} parent=1 // pred_check
      _
    $region55: #{clip_loss.1} parent=1 // pred_check_branch
      %677 = sbr.rel (0) target = $region57
    $region56: #{clip_loss.1} parent=1 // pred_region
      %678 = dma.done [#allocation4], 16
    $region57: #{clip_loss.1} parent=1 // pred_fallthru
      _
    %679 = sfence
    %680 = vsyncpa [#allocation3], 1
    %681 = vsyncpa [#allocation6], 1
    %682 = vsyncpa [#allocation9], 1
    %683 = vsyncpa [#allocation4], 1

</llo_original>
